<compile_context>
chip_gen: v7x
topology: tpu7x:2x2x1
jax: 0.10.0
libtpu: 0.0.40
codegen_flags: <defaults>
</compile_context>

<pallas_src>
import functools
import math

import jax
import jax.numpy as jnp
from jax.experimental import pallas as pl
from jax.experimental.pallas import tpu as pltpu


def _round_up(n: int, m: int) -> int:
    return ((n + m - 1) // m) * m


def _biaffine_kernel(d_ref, w_ref, h_ref, o_ref, *, n_out, lane_pad):
    # d_ref: (Bblk, X, Ip)   dependent features (compute dtype)
    # w_ref: (Ip, O*Ip)      W3[j, o*Ip + i] = W[o, i, j]
    # h_ref: (Bblk, Y, Ip)   head features
    # o_ref: (Bblk, X, round_up(Y*O, 128)) output, minor order (y, o) + zero pad
    bblk, y, ip = h_ref.shape
    x = d_ref.shape[1]

    d = d_ref[...]                                    # (Bblk, X, Ip)
    h = h_ref[...].reshape(bblk * y, ip)              # (Bblk*Y, Ip): batch folded into M
    w = w_ref[...]                                    # (Ip, O*Ip)

    # First MXU matmul: hw[(b,y), o*Ip + i] = sum_j h[b,y,j] * W[o,i,j]
    hw = jnp.dot(h, w, preferred_element_type=jnp.float32)      # (Bblk*Y, O*Ip) f32

    # Row-major reshape -> rows ordered (b, y, o): hw_rows[b, y*O + o, i].
    # (Relayout done in f32, then cast back to the MXU input dtype.)
    hw_rows = hw.reshape(bblk, y * n_out, ip).astype(d.dtype)   # (Bblk, Y*O, Ip)

    # Second (batched) MXU matmul, contracting the feature axis of both
    # operands (no transpose materialized):
    #   out[b, x, y*O + o] = sum_i d[b,x,i] * hw_rows[b, y*O+o, i]
    out = jnp.einsum('bxi,bri->bxr', d, hw_rows,
                     preferred_element_type=jnp.float32)        # (Bblk, X, Y*O) f32

    if lane_pad:
        # Lane-dense store: pad the minor dim up to a multiple of 128 so the
        # writeback is a full (unmasked) vector store.
        out = jnp.concatenate(
            [out, jnp.zeros((bblk, x, lane_pad), out.dtype)], axis=-1)

    o_ref[...] = out.astype(o_ref.dtype)


def _pad_features(x, bias: bool, ip: int):
    """Append the bias ones-column (if any) and zero-pad the feature axis to ip."""
    *lead, width = x.shape
    parts = [x]
    if bias:
        parts.append(jnp.ones((*lead, 1), x.dtype))
        width += 1
    if ip > width:
        parts.append(jnp.zeros((*lead, ip - width), x.dtype))
    return jnp.concatenate(parts, axis=-1) if len(parts) > 1 else x


def make_biaffine_w3(weight, compute_dtype=jnp.bfloat16):
    """Parameter-load-time relayout: W3[j, o*Ip + i] = W[o, i, j], (Ip, O*Ip).

    Done once when the parameter is created/loaded, NOT per forward call.
    """
    o, iw, iw2 = weight.shape
    assert iw == iw2
    ip = _round_up(iw, 128)
    w_pad = jnp.pad(weight, ((0, 0), (0, ip - iw), (0, ip - iw)))
    return jnp.transpose(w_pad, (2, 0, 1)).reshape(ip, o * ip).astype(compute_dtype)


def biaffine_forward(d, h, w3, *, bias: bool, out_dtype=jnp.float32, block_b=None):
    """d: (B, X, I), h: (B, Y, I), w3: (Ip, O*Ip) -> (B, X, Y, O) out_dtype."""
    b, x, i = d.shape
    bh, y, ih = h.shape
    assert b == bh and i == ih
    ip = w3.shape[0]
    o = w3.shape[1] // ip
    yo = y * o
    yop = _round_up(yo, 128)            # lane-dense output minor dim

    cdt = w3.dtype
    dp = _pad_features(d, bias, ip).astype(cdt)       # (B, X, Ip)
    hp = _pad_features(h, bias, ip).astype(cdt)       # (B, Y, Ip)

    cdt_bytes = jnp.dtype(cdt).itemsize
    out_bytes = jnp.dtype(out_dtype).itemsize

    def vmem_bytes(bb):
        w3_buf = ip * o * ip * cdt_bytes * 2                       # double-buffered
        io_buf = (bb * x * ip + bb * y * ip) * cdt_bytes * 2
        out_buf = bb * x * yop * out_bytes * 2
        live = bb * yo * ip * (4 + cdt_bytes) + bb * x * yop * 4   # hw / hw_rows / acc
        return w3_buf + io_buf + out_buf + live

    if block_b is None:
        # Aim for >= ~512 rows in the first matmul while staying inside a
        # conservative VMEM budget (headroom under v7x's 64 MiB physical VMEM).
        cap = min(b, max(1, -(-512 // y)))
        block_b = 1
        for cand in range(cap, 0, -1):
            if b % cand == 0 and vmem_bytes(cand) <= 40 * 1024 * 1024:
                block_b = cand
                break
    assert b % block_b == 0, (b, block_b)

    vmem_limit = int(min(64 * 1024 * 1024,
                         max(32 * 1024 * 1024, 2 * vmem_bytes(block_b))))

    kernel = functools.partial(_biaffine_kernel, n_out=o, lane_pad=yop - yo)

    out = pl.pallas_call(
        kernel,
        out_shape=jax.ShapeDtypeStruct((b, x, yop), out_dtype),
        grid_spec=pltpu.PrefetchScalarGridSpec(
            num_scalar_prefetch=0,
            grid=(b // block_b,),
            in_specs=[
                pl.BlockSpec((block_b, x, ip), lambda bb: (bb, 0, 0)),
                # constant block index -> W3 fetched once, reused for all steps
                pl.BlockSpec((ip, o * ip), lambda bb: (0, 0)),
                pl.BlockSpec((block_b, y, ip), lambda bb: (bb, 0, 0)),
            ],
            out_specs=pl.BlockSpec((block_b, x, yop), lambda bb: (bb, 0, 0)),
        ),
        compiler_params=pltpu.CompilerParams(
            # batch-block axis shards across the 2 TensorCores on v7x
            dimension_semantics=("parallel",),
            vmem_limit_bytes=vmem_limit,
        ),
    )(dp, w3, hp)

    if yop != yo:
        out = out[..., :yo]             # trim the lane padding (no-op in prod shapes)
    # (B, X, Y*O) with minor order (y, o) -> (B, X, Y, O): pure minor-axis split.
    return out.reshape(b, x, y, o)


def init_biaffine_weight(key, input_dim: int, output_dim: int, bias: bool):
    """xavier_uniform init matching nn.init.xavier_uniform_ for (O, Iw, Iw)."""
    weight_input = input_dim + 1 if bias else input_dim
    fan_in = weight_input * weight_input
    fan_out = output_dim * weight_input
    bound = math.sqrt(6.0 / (fan_in + fan_out))
    return jax.random.uniform(
        key, (output_dim, weight_input, weight_input),
        dtype=jnp.float32, minval=-bound, maxval=bound,
    )


if __name__ == "__main__":
    # Small shapes: batch=2, num_dependents=8, num_heads=8, input_dim=32, output_dim=4
    B, X, Y, I, O = 2, 8, 8, 32, 4
    bias = True

    key = jax.random.PRNGKey(0)
    kd, kh, kw = jax.random.split(key, 3)
    d = jax.random.normal(kd, (B, X, I), dtype=jnp.float32)
    h = jax.random.normal(kh, (B, Y, I), dtype=jnp.float32)
    weight = init_biaffine_weight(kw, I, O, bias)

    # Parameter-time W3 construction (hoisted out of the forward pass).
    w3_bf16 = make_biaffine_w3(weight, jnp.bfloat16)
    w3_f32 = make_biaffine_w3(weight, jnp.float32)

    # Default fast path: bf16 MXU inputs, f32 accumulation, f32 output.
    out = biaffine_forward(d, h, w3_bf16, bias=bias)
    out = jax.block_until_ready(out)
    assert out.shape == (B, X, Y, O), out.shape

    # Reference einsum. Inputs rounded to bf16 so the check is tight on kernel
    # *logic* while allowing for the bf16 operand rounding of the fast path.
    db = jnp.concatenate([d, jnp.ones((B, X, 1), d.dtype)], axis=-1)
    hb = jnp.concatenate([h, jnp.ones((B, Y, 1), h.dtype)], axis=-1)

    def _bf16(v):
        return v.astype(jnp.bfloat16).astype(jnp.float32)

    ref_bf16 = jnp.einsum(
        "bxi,oij,byj->bxyo", _bf16(db), _bf16(weight), _bf16(hb),
        precision=jax.lax.Precision.HIGHEST)
    assert jnp.allclose(out, ref_bf16, atol=5e-2, rtol=2e-2), (
        "bf16 path mismatch, max abs diff = %f"
        % float(jnp.max(jnp.abs(out - ref_bf16))))

    # Full float32 compute path (validation).
    out32 = biaffine_forward(d, h, w3_f32, bias=bias)
    out32 = jax.block_until_ready(out32)
    ref32 = jnp.einsum("bxi,oij,byj->bxyo", db, weight, hb,
                       precision=jax.lax.Precision.HIGHEST)
    assert jnp.allclose(out32, ref32, atol=5e-2, rtol=2e-2), (
        "f32 path mismatch, max abs diff = %f"
        % float(jnp.max(jnp.abs(out32 - ref32))))

    print("KERNEL_OK")
</pallas_src>

<mosaic_0001>
module attributes {stable_mosaic.version = 11 : i64} {
  func.func @_biaffine_kernel(%arg0: i32, %arg1: memref<2x8x128xbf16, #tpu.memory_space<vmem>>, %arg2: memref<128x512xbf16, #tpu.memory_space<vmem>>, %arg3: memref<2x8x128xbf16, #tpu.memory_space<vmem>>, %arg4: memref<2x8x128xf32, #tpu.memory_space<vmem>>) attributes {dimension_semantics = [#tpu.dimension_semantics<parallel>], iteration_bounds = array<i64: 1>, scalar_prefetch = 0 : i64, scratch_operands = 0 : i64, tpu.core_type = #tpu.core_type<tc>, window_params = [{transform_indices = @transform_0, window_bounds = array<i64: 2, 8, 128>}, {pipeline_mode = #tpu.pipeline_mode<synchronous>, transform_indices = @transform_1, window_bounds = array<i64: 128, 512>}, {transform_indices = @transform_2, window_bounds = array<i64: 2, 8, 128>}, {transform_indices = @transform_3, window_bounds = array<i64: 2, 8, 128>}]} {
    %c0 = arith.constant 0 : index
    %c0_0 = arith.constant 0 : index
    %c0_1 = arith.constant 0 : index
    %0 = vector.load %arg1[%c0, %c0_0, %c0_1] : memref<2x8x128xbf16, #tpu.memory_space<vmem>>, vector<2x8x128xbf16>
    %c0_2 = arith.constant 0 : index
    %c0_3 = arith.constant 0 : index
    %c0_4 = arith.constant 0 : index
    %1 = vector.load %arg3[%c0_2, %c0_3, %c0_4] : memref<2x8x128xbf16, #tpu.memory_space<vmem>>, vector<2x8x128xbf16>
    %2 = vector.shape_cast %1 : vector<2x8x128xbf16> to vector<16x128xbf16>
    %c0_5 = arith.constant 0 : index
    %c0_6 = arith.constant 0 : index
    %3 = vector.load %arg2[%c0_5, %c0_6] : memref<128x512xbf16, #tpu.memory_space<vmem>>, vector<128x512xbf16>
    %cst = arith.constant dense<0.000000e+00> : vector<16x512xf32>
    %4 = tpu.matmul %2, %3, %cst {dimension_numbers = #tpu.dot_dimension_numbers<[1], [0], [0], [1], [0, 0, 1, 1], [], []>} : vector<16x128xbf16>, vector<128x512xbf16>, vector<16x512xf32> -> vector<16x512xf32>
    %5 = vector.shape_cast %4 : vector<16x512xf32> to vector<2x32x128xf32>
    %6 = arith.truncf %5 : vector<2x32x128xf32> to vector<2x32x128xbf16>
    "tpu.trace_start"() <{level = 10 : i32, message = "bxi,bri->bxr"}> : () -> ()
    %cst_7 = arith.constant dense<0.000000e+00> : vector<2x8x32xf32>
    %7 = tpu.matmul %0, %6, %cst_7 {dimension_numbers = #tpu.dot_dimension_numbers<[2], [2], [1], [1], [0, 0, 0, 1, 1, 1], [0], [0]>} : vector<2x8x128xbf16>, vector<2x32x128xbf16>, vector<2x8x32xf32> -> vector<2x8x32xf32>
    %cst_8 = arith.constant 0.000000e+00 : f32
    "tpu.trace_stop"() : () -> ()
    %8 = vector.broadcast %cst_8 : f32 to vector<2x8x96xf32>
    %9 = tpu.concatenate %7, %8 in 2 : vector<2x8x32xf32>, vector<2x8x96xf32> -> vector<2x8x128xf32>
    %c0_9 = arith.constant 0 : index
    %c0_10 = arith.constant 0 : index
    %c0_11 = arith.constant 0 : index
    %10 = vector.load %arg4[%c0_9, %c0_10, %c0_11] : memref<2x8x128xf32, #tpu.memory_space<vmem>>, vector<2x8x128xf32>
    tpu.vector_store %arg4[%c0_9, %c0_10, %c0_11], %9 {strides = array<i32>} : memref<2x8x128xf32, #tpu.memory_space<vmem>>, vector<2x8x128xf32>,
    return
  }
  func.func @transform_0(%arg0: i32) -> (i32, i32, i32) {
    %c0_i32 = arith.constant 0 : i32
    %c0_i32_0 = arith.constant 0 : i32
    %c0_i32_1 = arith.constant 0 : i32
    return %arg0, %c0_i32, %c0_i32_0 : i32, i32, i32
  }
  func.func @transform_1(%arg0: i32) -> (i32, i32) {
    %c0_i32 = arith.constant 0 : i32
    %c0_i32_0 = arith.constant 0 : i32
    %c0_i32_1 = arith.constant 0 : i32
    return %c0_i32, %c0_i32_0 : i32, i32
  }
  func.func @transform_2(%arg0: i32) -> (i32, i32, i32) {
    %c0_i32 = arith.constant 0 : i32
    %c0_i32_0 = arith.constant 0 : i32
    %c0_i32_1 = arith.constant 0 : i32
    return %arg0, %c0_i32, %c0_i32_0 : i32, i32, i32
  }
  func.func @transform_3(%arg0: i32) -> (i32, i32, i32) {
    %c0_i32 = arith.constant 0 : i32
    %c0_i32_0 = arith.constant 0 : i32
    %c0_i32_1 = arith.constant 0 : i32
    return %arg0, %c0_i32, %c0_i32_0 : i32, i32, i32
  }
}

</mosaic_0001>

<llo_original>
// kernel: tpu_custom_call.1
$region0: #{tpu_custom_call.1}
  #allocation0 [shape = 'u32[]', space=smem, size = 0x4, offset = 0x4, fixed_abs, tag = 'smem constant byte address 0x4 - core index']
  #allocation1 [shape = 'u32[144,128]{1,0:T(1,128)}', space=vmem, size = 0x12000, scoped, tag = 'internal scratch']
  %s0 = inlined_call_operand.hbm [shape: bf16[2,8,128], index: 0, kind: input, shape index: {}]
  %s1 = inlined_call_operand.hbm [shape: bf16[128,512], index: 1, kind: input, shape index: {}]
  %s2 = inlined_call_operand.hbm [shape: bf16[2,8,128], index: 2, kind: input, shape index: {}]
  %s3 = inlined_call_operand.hbm [shape: f32[2,8,128], index: 3, kind: output, shape index: {}]
  %s4 = sld [smem:[#allocation0]]
  $region34: #{tpu_custom_call.1} parent=0
    _
  %s6 = ssub.s32 1, %s4
  %s7 = scalar_select 0, %s6, %s4
  $region1: #{tpu_custom_call.1} parent=0
    #allocation2 [shape = 'u8[4096]{0}', space=vmem, size = 0x1000, scoped, tag = 'input window, operand 0, single buffered']
    #allocation3 [shape = 's32[1]{0}', space=sflag, size = 0x4, scoped, tag = 'scoped memory for tpu_custom_call.1']
    #allocation4 [shape = 's32[1]{0}', space=sflag, size = 0x4, scoped, tag = 'scoped memory for tpu_custom_call.1']
    #allocation5 [shape = 'u8[131072]{0}', space=vmem, size = 0x20000, scoped, tag = 'input window, operand 1, single buffered']
    #allocation6 [shape = 's32[1]{0}', space=sflag, size = 0x4, scoped, tag = 'scoped memory for tpu_custom_call.1']
    #allocation7 [shape = 'u8[4096]{0}', space=vmem, size = 0x1000, scoped, tag = 'input window, operand 2, single buffered']
    #allocation8 [shape = 'u8[8192]{0}', space=vmem, size = 0x2000, scoped, tag = 'output window, operand 0, single buffered']
    %8 = vsyncpa [#allocation3], 0
    %9 = vsyncpa [#allocation6], 0
    %10 = vsyncpa [#allocation4], 0
    // Predicated region
    $region2: #{tpu_custom_call.1} parent=1 // pred_check
      _
    $region3: #{tpu_custom_call.1} parent=1 // pred_check_branch
      %12 = sbr.rel (0) target = $region5
    $region4: #{tpu_custom_call.1} parent=1 // pred_region
      %s14 = ssub.s32 128, 128
      %15 = vsyncadd [#allocation3], %s14
      %s16 = sshll.u32 [#allocation2], 4
      %s17 = int_to_ptr.vmem [resolvable:$true] %s16
      %22 = dma.hbm_to_vmem [thread:$0]  %s0, 128, %s17, [#allocation3], 64, 64, 4
    $region5: #{tpu_custom_call.1} parent=1 // pred_fallthru
      _
    // Predicated region
    $region6: #{tpu_custom_call.1} parent=1 // pred_check
      _
    $region7: #{tpu_custom_call.1} parent=1 // pred_check_branch
      %24 = sbr.rel (0) target = $region9
    $region8: #{tpu_custom_call.1} parent=1 // pred_region
      %s26 = ssub.s32 4096, 4096
      %27 = vsyncadd [#allocation6], %s26
      %s28 = sshll.u32 [#allocation5], 4
      %s29 = int_to_ptr.vmem [resolvable:$true] %s28
      %34 = dma.hbm_to_vmem [thread:$0]  %s1, 4096, %s29, [#allocation6], 256, 256, 16
    $region9: #{tpu_custom_call.1} parent=1 // pred_fallthru
      _
    // Predicated region
    $region10: #{tpu_custom_call.1} parent=1 // pred_check
      _
    $region11: #{tpu_custom_call.1} parent=1 // pred_check_branch
      %36 = sbr.rel (0) target = $region13
    $region12: #{tpu_custom_call.1} parent=1 // pred_region
      %s38 = ssub.s32 128, 128
      %39 = vsyncadd [#allocation6], %s38
      %s40 = sshll.u32 [#allocation7], 4
      %s41 = int_to_ptr.vmem [resolvable:$true] %s40
      %46 = dma.hbm_to_vmem [thread:$0]  %s2, 128, %s41, [#allocation6], 64, 64, 4
    $region13: #{tpu_custom_call.1} parent=1 // pred_fallthru
      _
    // Predicated region
    $region14: #{tpu_custom_call.1} parent=1 // pred_check
      _
    $region15: #{tpu_custom_call.1} parent=1 // pred_check_branch
      %48 = sbr.rel (0) target = $region17
    $region16: #{tpu_custom_call.1} parent=1 // pred_region
      %49 = dma.done [#allocation3], 128
    $region17: #{tpu_custom_call.1} parent=1 // pred_fallthru
      _
    // Predicated region
    $region18: #{tpu_custom_call.1} parent=1 // pred_check
      _
    $region19: #{tpu_custom_call.1} parent=1 // pred_check_branch
      %51 = sbr.rel (0) target = $region21
    $region20: #{tpu_custom_call.1} parent=1 // pred_region
      %52 = dma.done [#allocation6], 4096
    $region21: #{tpu_custom_call.1} parent=1 // pred_fallthru
      _
    // Predicated region
    $region22: #{tpu_custom_call.1} parent=1 // pred_check
      _
    $region23: #{tpu_custom_call.1} parent=1 // pred_check_branch
      %54 = sbr.rel (0) target = $region25
    $region24: #{tpu_custom_call.1} parent=1 // pred_region
      %55 = dma.done [#allocation6], 128
    $region25: #{tpu_custom_call.1} parent=1 // pred_fallthru
      _
    %v57 = vld [vmem:[#allocation2] sm:$0xf]
    %v58 = vld [vmem:[#allocation2 + $0x4] sm:$0xf]
    %v59 = vld [vmem:[#allocation7] sm:$0xf]
    %v60 = vld [vmem:[#allocation7 + $0x4] sm:$0xf]
    %v61 = vld [vmem:[#allocation5] sm:$0xff]
    %v62 = vld [vmem:[#allocation5 + $0x8] sm:$0xff]
    %v63 = vld [vmem:[#allocation5 + $0x10] sm:$0xff]
    %v64 = vld [vmem:[#allocation5 + $0x18] sm:$0xff]
    %v65 = vld [vmem:[#allocation5 + $0x20] sm:$0xff]
    %v66 = vld [vmem:[#allocation5 + $0x28] sm:$0xff]
    %v67 = vld [vmem:[#allocation5 + $0x30] sm:$0xff]
    %v68 = vld [vmem:[#allocation5 + $0x38] sm:$0xff]
    %v69 = vld [vmem:[#allocation5 + $0x40] sm:$0xff]
    %v70 = vld [vmem:[#allocation5 + $0x48] sm:$0xff]
    %v71 = vld [vmem:[#allocation5 + $0x50] sm:$0xff]
    %v72 = vld [vmem:[#allocation5 + $0x58] sm:$0xff]
    %v73 = vld [vmem:[#allocation5 + $0x60] sm:$0xff]
    %v74 = vld [vmem:[#allocation5 + $0x68] sm:$0xff]
    %v75 = vld [vmem:[#allocation5 + $0x70] sm:$0xff]
    %v76 = vld [vmem:[#allocation5 + $0x78] sm:$0xff]
    %v77 = vld [vmem:[#allocation5 + $0x80] sm:$0xff]
    %v78 = vld [vmem:[#allocation5 + $0x88] sm:$0xff]
    %v79 = vld [vmem:[#allocation5 + $0x90] sm:$0xff]
    %v80 = vld [vmem:[#allocation5 + $0x98] sm:$0xff]
    %v81 = vld [vmem:[#allocation5 + $0xa0] sm:$0xff]
    %v82 = vld [vmem:[#allocation5 + $0xa8] sm:$0xff]
    %v83 = vld [vmem:[#allocation5 + $0xb0] sm:$0xff]
    %v84 = vld [vmem:[#allocation5 + $0xb8] sm:$0xff]
    %v85 = vld [vmem:[#allocation5 + $0xc0] sm:$0xff]
    %v86 = vld [vmem:[#allocation5 + $0xc8] sm:$0xff]
    %v87 = vld [vmem:[#allocation5 + $0xd0] sm:$0xff]
    %v88 = vld [vmem:[#allocation5 + $0xd8] sm:$0xff]
    %v89 = vld [vmem:[#allocation5 + $0xe0] sm:$0xff]
    %v90 = vld [vmem:[#allocation5 + $0xe8] sm:$0xff]
    %v91 = vld [vmem:[#allocation5 + $0xf0] sm:$0xff]
    %v92 = vld [vmem:[#allocation5 + $0xf8] sm:$0xff]
    %v95 = vunpack.c.l.b16 %v59
    %v96 = vunpack.c.l.b16 %v60
    %v97 = vpack.c.b16 %v96, %v95
    %v131 = vunpack.c.l.b16 %v61
    %v132 = vunpack.c.h.b16 %v61
    %v133 = vunpack.c.l.b16 %v62
    %v134 = vunpack.c.h.b16 %v62
    %v135 = vunpack.c.l.b16 %v63
    %v136 = vunpack.c.h.b16 %v63
    %v137 = vunpack.c.l.b16 %v64
    %v138 = vunpack.c.h.b16 %v64
    %v139 = vunpack.c.l.b16 %v65
    %v140 = vunpack.c.h.b16 %v65
    %v141 = vunpack.c.l.b16 %v66
    %v142 = vunpack.c.h.b16 %v66
    %v143 = vunpack.c.l.b16 %v67
    %v144 = vunpack.c.h.b16 %v67
    %v145 = vunpack.c.l.b16 %v68
    %v146 = vunpack.c.h.b16 %v68
    %v147 = vunpack.c.l.b16 %v69
    %v148 = vunpack.c.h.b16 %v69
    %v149 = vunpack.c.l.b16 %v70
    %v150 = vunpack.c.h.b16 %v70
    %v151 = vunpack.c.l.b16 %v71
    %v152 = vunpack.c.h.b16 %v71
    %v153 = vunpack.c.l.b16 %v72
    %v154 = vunpack.c.h.b16 %v72
    %v155 = vunpack.c.l.b16 %v73
    %v156 = vunpack.c.h.b16 %v73
    %v157 = vunpack.c.l.b16 %v74
    %v158 = vunpack.c.h.b16 %v74
    %v159 = vunpack.c.l.b16 %v75
    %v160 = vunpack.c.h.b16 %v75
    %v161 = vunpack.c.l.b16 %v76
    %v162 = vunpack.c.h.b16 %v76
    %v163 = vunpack.c.l.b16 %v77
    %v164 = vunpack.c.h.b16 %v77
    %v165 = vunpack.c.l.b16 %v78
    %v166 = vunpack.c.h.b16 %v78
    %v167 = vunpack.c.l.b16 %v79
    %v168 = vunpack.c.h.b16 %v79
    %v169 = vunpack.c.l.b16 %v80
    %v170 = vunpack.c.h.b16 %v80
    %v171 = vunpack.c.l.b16 %v81
    %v172 = vunpack.c.h.b16 %v81
    %v173 = vunpack.c.l.b16 %v82
    %v174 = vunpack.c.h.b16 %v82
    %v175 = vunpack.c.l.b16 %v83
    %v176 = vunpack.c.h.b16 %v83
    %v177 = vunpack.c.l.b16 %v84
    %v178 = vunpack.c.h.b16 %v84
    %v179 = vunpack.c.l.b16 %v85
    %v180 = vunpack.c.h.b16 %v85
    %v181 = vunpack.c.l.b16 %v86
    %v182 = vunpack.c.h.b16 %v86
    %v183 = vunpack.c.l.b16 %v87
    %v184 = vunpack.c.h.b16 %v87
    %v185 = vunpack.c.l.b16 %v88
    %v186 = vunpack.c.h.b16 %v88
    %v187 = vunpack.c.l.b16 %v89
    %v188 = vunpack.c.h.b16 %v89
    %v189 = vunpack.c.l.b16 %v90
    %v190 = vunpack.c.h.b16 %v90
    %v191 = vunpack.c.l.b16 %v91
    %v192 = vunpack.c.h.b16 %v91
    %v193 = vunpack.c.l.b16 %v92
    %v194 = vunpack.c.h.b16 %v92
    %v195 = vpack.c.b16 %v135, %v131
    %v196 = vpack.c.b16 %v136, %v132
    %v197 = vpack.c.b16 %v137, %v133
    %v198 = vpack.c.b16 %v138, %v134
    %v199 = vpack.c.b16 %v143, %v139
    %v200 = vpack.c.b16 %v144, %v140
    %v201 = vpack.c.b16 %v145, %v141
    %v202 = vpack.c.b16 %v146, %v142
    %v203 = vpack.c.b16 %v151, %v147
    %v204 = vpack.c.b16 %v152, %v148
    %v205 = vpack.c.b16 %v153, %v149
    %v206 = vpack.c.b16 %v154, %v150
    %v207 = vpack.c.b16 %v159, %v155
    %v208 = vpack.c.b16 %v160, %v156
    %v209 = vpack.c.b16 %v161, %v157
    %v210 = vpack.c.b16 %v162, %v158
    %v211 = vpack.c.b16 %v167, %v163
    %v212 = vpack.c.b16 %v168, %v164
    %v213 = vpack.c.b16 %v169, %v165
    %v214 = vpack.c.b16 %v170, %v166
    %v215 = vpack.c.b16 %v175, %v171
    %v216 = vpack.c.b16 %v176, %v172
    %v217 = vpack.c.b16 %v177, %v173
    %v218 = vpack.c.b16 %v178, %v174
    %v219 = vpack.c.b16 %v183, %v179
    %v220 = vpack.c.b16 %v184, %v180
    %v221 = vpack.c.b16 %v185, %v181
    %v222 = vpack.c.b16 %v186, %v182
    %v223 = vpack.c.b16 %v191, %v187
    %v224 = vpack.c.b16 %v192, %v188
    %v225 = vpack.c.b16 %v193, %v189
    %v226 = vpack.c.b16 %v194, %v190
    %259 = vmatprep.subr.bf16.mxu0 %v196
    %260 = vmatpush1.bf16.msra.mxu0 %v195
    %261 = vmatprep.subr.bf16.mxu0 %v200
    %262 = vmatpush1.bf16.msra.mxu0 %v199
    %263 = vmatprep.subr.bf16.mxu0 %v204
    %264 = vmatpush1.bf16.msra.mxu0 %v203
    %265 = vmatprep.subr.bf16.mxu0 %v208
    %266 = vmatpush1.bf16.msra.mxu0 %v207
    %267 = vmatprep.subr.bf16.mxu0 %v212
    %268 = vmatpush1.bf16.msra.mxu0 %v211
    %269 = vmatprep.subr.bf16.mxu0 %v216
    %270 = vmatpush1.bf16.msra.mxu0 %v215
    %271 = vmatprep.subr.bf16.mxu0 %v220
    %272 = vmatpush1.bf16.msra.mxu0 %v219
    %273 = vmatprep.subr.bf16.mxu0 %v224
    %274 = vmatpush1.bf16.msra.mxu0 %v223
    %275 = vmatprep.subr.bf16.mxu0 0
    %276 = vmatpush1.bf16.msra.mxu0 0
    %277 = vmatprep.subr.bf16.mxu0 0
    %278 = vmatpush1.bf16.msra.mxu0 0
    %279 = vmatprep.subr.bf16.mxu0 0
    %280 = vmatpush1.bf16.msra.mxu0 0
    %281 = vmatprep.subr.bf16.mxu0 0
    %282 = vmatpush1.bf16.msra.mxu0 0
    %283 = vmatprep.subr.bf16.mxu0 0
    %284 = vmatpush1.bf16.msra.mxu0 0
    %285 = vmatprep.subr.bf16.mxu0 0
    %286 = vmatpush1.bf16.msra.mxu0 0
    %287 = vmatprep.subr.bf16.mxu0 0
    %288 = vmatpush1.bf16.msra.mxu0 0
    %289 = vmatprep.subr.bf16.mxu0 0
    %290 = vmatpush1.bf16.msra.mxu0 0
    %291 = vmatprep.mubr.bf16.mxu0 0
    %292 = vmatmul.mubr.bf16.gmra.mrb[0].mxu0 %v97
    %v293 = vpop.f32.mrb[0].mxu0
    %v294 = vadd.f32 0.0, %v293
    %v295 = vpop.f32.mrb[0].mxu0
    %v296 = vadd.f32 0.0, %v295
    %v297 = vpop.f32.mrb[0].mxu0
    %v298 = vadd.f32 0.0, %v297
    %v299 = vpop.f32.mrb[0].mxu0
    %v300 = vadd.f32 0.0, %v299
    %301 = vdwg.mxu0
    %302 = vmatprep.subr.bf16.mxu0 %v198
    %303 = vmatpush1.bf16.msra.mxu0 %v197
    %304 = vmatprep.subr.bf16.mxu0 %v202
    %305 = vmatpush1.bf16.msra.mxu0 %v201
    %306 = vmatprep.subr.bf16.mxu0 %v206
    %307 = vmatpush1.bf16.msra.mxu0 %v205
    %308 = vmatprep.subr.bf16.mxu0 %v210
    %309 = vmatpush1.bf16.msra.mxu0 %v209
    %310 = vmatprep.subr.bf16.mxu0 %v214
    %311 = vmatpush1.bf16.msra.mxu0 %v213
    %312 = vmatprep.subr.bf16.mxu0 %v218
    %313 = vmatpush1.bf16.msra.mxu0 %v217
    %314 = vmatprep.subr.bf16.mxu0 %v222
    %315 = vmatpush1.bf16.msra.mxu0 %v221
    %316 = vmatprep.subr.bf16.mxu0 %v226
    %317 = vmatpush1.bf16.msra.mxu0 %v225
    %318 = vmatprep.subr.bf16.mxu0 0
    %319 = vmatpush1.bf16.msra.mxu0 0
    %320 = vmatprep.subr.bf16.mxu0 0
    %321 = vmatpush1.bf16.msra.mxu0 0
    %322 = vmatprep.subr.bf16.mxu0 0
    %323 = vmatpush1.bf16.msra.mxu0 0
    %324 = vmatprep.subr.bf16.mxu0 0
    %325 = vmatpush1.bf16.msra.mxu0 0
    %326 = vmatprep.subr.bf16.mxu0 0
    %327 = vmatpush1.bf16.msra.mxu0 0
    %328 = vmatprep.subr.bf16.mxu0 0
    %329 = vmatpush1.bf16.msra.mxu0 0
    %330 = vmatprep.subr.bf16.mxu0 0
    %331 = vmatpush1.bf16.msra.mxu0 0
    %332 = vmatprep.subr.bf16.mxu0 0
    %333 = vmatpush1.bf16.msra.mxu0 0
    %334 = vmatprep.mubr.bf16.mxu0 0
    %335 = vmatmul.mubr.bf16.gmra.mrb[0].mxu0 %v97
    %v336 = vpop.f32.mrb[0].mxu0
    %v337 = vadd.f32 0.0, %v336
    %v338 = vpop.f32.mrb[0].mxu0
    %v339 = vadd.f32 0.0, %v338
    %v340 = vpop.f32.mrb[0].mxu0
    %v341 = vadd.f32 0.0, %v340
    %v342 = vpop.f32.mrb[0].mxu0
    %v343 = vadd.f32 0.0, %v342
    %344 = vdwg.mxu0
    %v353 = vcombine.low %v294, %v296
    %v354 = vcombine.high %v294, %v296
    %v355 = vcombine.low %v337, %v339
    %v356 = vcombine.high %v337, %v339
    %v358 = vunpack.c.l.s4 1983009808
    %v359 = vunpack.c.0.s8 %v358
    %v360 = vlaneseq
    %v361 = vshrl.u32 %v360, 7
    %v362 = vsub.s32 %v359, %v361
    %v363 = vrot.slane %v353, %v362
    %v365 = vunpack.c.l.s4 1983009808
    %v366 = vunpack.c.0.s8 %v365
    %v367 = vlaneseq
    %v368 = vshrl.u32 %v367, 7
    %v369 = vsub.s32 %v366, %v368
    %v370 = vrot.slane %v354, %v369
    %v372 = vunpack.c.l.s4 1983009808
    %v373 = vunpack.c.0.s8 %v372
    %v374 = vlaneseq
    %v375 = vshrl.u32 %v374, 7
    %v376 = vsub.s32 %v373, %v375
    %v377 = vrot.slane %v355, %v376
    %v379 = vunpack.c.l.s4 1983009808
    %v380 = vunpack.c.0.s8 %v379
    %v381 = vlaneseq
    %v382 = vshrl.u32 %v381, 7
    %v383 = vsub.s32 %v380, %v382
    %v384 = vrot.slane %v356, %v383
    %v385 = vcombine.low %v363, %v377
    %v386 = vcombine.high %v363, %v377
    %v387 = vcombine.low %v370, %v384
    %v388 = vcombine.high %v370, %v384
    %v389 = vcombine.low %v298, %v300
    %v390 = vcombine.high %v298, %v300
    %v391 = vcombine.low %v341, %v343
    %v392 = vcombine.high %v341, %v343
    %v394 = vunpack.c.l.s4 1983009808
    %v395 = vunpack.c.0.s8 %v394
    %v396 = vlaneseq
    %v397 = vshrl.u32 %v396, 7
    %v398 = vsub.s32 %v395, %v397
    %v399 = vrot.slane %v389, %v398
    %v401 = vunpack.c.l.s4 1983009808
    %v402 = vunpack.c.0.s8 %v401
    %v403 = vlaneseq
    %v404 = vshrl.u32 %v403, 7
    %v405 = vsub.s32 %v402, %v404
    %v406 = vrot.slane %v390, %v405
    %v408 = vunpack.c.l.s4 1983009808
    %v409 = vunpack.c.0.s8 %v408
    %v410 = vlaneseq
    %v411 = vshrl.u32 %v410, 7
    %v412 = vsub.s32 %v409, %v411
    %v413 = vrot.slane %v391, %v412
    %v415 = vunpack.c.l.s4 1983009808
    %v416 = vunpack.c.0.s8 %v415
    %v417 = vlaneseq
    %v418 = vshrl.u32 %v417, 7
    %v419 = vsub.s32 %v416, %v418
    %v420 = vrot.slane %v392, %v419
    %v421 = vcombine.low %v399, %v413
    %v422 = vcombine.high %v399, %v413
    %v423 = vcombine.low %v406, %v420
    %v424 = vcombine.high %v406, %v420
    %v434 = vunpack.c.l.s4 1966171168
    %v435 = vunpack.c.0.s8 %v434
    %v436 = vlaneseq
    %v437 = vshrl.u32 %v436, 7
    %v438 = vsub.s32 %v435, %v437
    %v439 = vrot.slane %v385, %v438
    %v441 = vunpack.c.l.s4 1966171168
    %v442 = vunpack.c.0.s8 %v441
    %v443 = vlaneseq
    %v444 = vshrl.u32 %v443, 7
    %v445 = vsub.s32 %v442, %v444
    %v446 = vrot.slane %v386, %v445
    %v448 = vunpack.c.l.s4 1966171168
    %v449 = vunpack.c.0.s8 %v448
    %v450 = vlaneseq
    %v451 = vshrl.u32 %v450, 7
    %v452 = vsub.s32 %v449, %v451
    %v453 = vrot.slane %v387, %v452
    %v455 = vunpack.c.l.s4 1966171168
    %v456 = vunpack.c.0.s8 %v455
    %v457 = vlaneseq
    %v458 = vshrl.u32 %v457, 7
    %v459 = vsub.s32 %v456, %v458
    %v460 = vrot.slane %v388, %v459
    %v462 = vunpack.c.l.s4 1966171168
    %v463 = vunpack.c.0.s8 %v462
    %v464 = vlaneseq
    %v465 = vshrl.u32 %v464, 7
    %v466 = vsub.s32 %v463, %v465
    %v467 = vrot.slane %v421, %v466
    %v469 = vunpack.c.l.s4 1966171168
    %v470 = vunpack.c.0.s8 %v469
    %v471 = vlaneseq
    %v472 = vshrl.u32 %v471, 7
    %v473 = vsub.s32 %v470, %v472
    %v474 = vrot.slane %v422, %v473
    %v476 = vunpack.c.l.s4 1966171168
    %v477 = vunpack.c.0.s8 %v476
    %v478 = vlaneseq
    %v479 = vshrl.u32 %v478, 7
    %v480 = vsub.s32 %v477, %v479
    %v481 = vrot.slane %v423, %v480
    %v483 = vunpack.c.l.s4 1966171168
    %v484 = vunpack.c.0.s8 %v483
    %v485 = vlaneseq
    %v486 = vshrl.u32 %v485, 7
    %v487 = vsub.s32 %v484, %v486
    %v488 = vrot.slane %v424, %v487
    %v489 = vpack.c.bf16 %v446, %v439
    %v490 = vpack.c.bf16 %v460, %v453
    %v491 = vpack.c.bf16 %v474, %v467
    %v492 = vpack.c.bf16 %v488, %v481
    %493 = vmatprep.subr.bf16.mxu0 0
    %494 = vmatpush1.bf16.xpose.msra.mxu0 %v489
    %495 = vmatprep.subr.bf16.mxu0 0
    %496 = vmatpush1.bf16.xpose.msra.mxu0 %v490
    %497 = vmatprep.subr.bf16.mxu0 0
    %498 = vmatpush1.bf16.xpose.msra.mxu0 0
    %499 = vmatprep.subr.bf16.mxu0 0
    %500 = vmatpush1.bf16.xpose.msra.mxu0 0
    %501 = vmatprep.subr.bf16.mxu0 0
    %502 = vmatpush1.bf16.xpose.msra.mxu0 0
    %503 = vmatprep.subr.bf16.mxu0 0
    %504 = vmatpush1.bf16.xpose.msra.mxu0 0
    %505 = vmatprep.subr.bf16.mxu0 0
    %506 = vmatpush1.bf16.xpose.msra.mxu0 0
    %507 = vmatprep.subr.bf16.mxu0 0
    %508 = vmatpush1.bf16.xpose.msra.mxu0 0
    %509 = vmatprep.subr.bf16.mxu0 0
    %510 = vmatpush1.bf16.xpose.msra.mxu0 0
    %511 = vmatprep.subr.bf16.mxu0 0
    %512 = vmatpush1.bf16.xpose.msra.mxu0 0
    %513 = vmatprep.subr.bf16.mxu0 0
    %514 = vmatpush1.bf16.xpose.msra.mxu0 0
    %515 = vmatprep.subr.bf16.mxu0 0
    %516 = vmatpush1.bf16.xpose.msra.mxu0 0
    %517 = vmatprep.subr.bf16.mxu0 0
    %518 = vmatpush1.bf16.xpose.msra.mxu0 0
    %519 = vmatprep.subr.bf16.mxu0 0
    %520 = vmatpush1.bf16.xpose.msra.mxu0 0
    %521 = vmatprep.subr.bf16.mxu0 0
    %522 = vmatpush1.bf16.xpose.msra.mxu0 0
    %523 = vmatprep.subr.bf16.mxu0 0
    %524 = vmatpush1.bf16.xpose.msra.mxu0 0
    %525 = vmatprep.mubr.bf16.mxu0 0
    %526 = vmatmul.mubr.bf16.gmra.mrb[0].mxu0 %v57
    %v527 = vpop.f32.mrb[0].mxu0
    %v528 = vadd.f32 0.0, %v527
    %v529 = vpop.f32.mrb[0].mxu0
    %v530 = vpop.f32.mrb[0].mxu0
    %v531 = vpop.f32.mrb[0].mxu0
    %532 = vdwg.mxu0
    %533 = vmatprep.subr.bf16.mxu0 0
    %534 = vmatpush1.bf16.xpose.msra.mxu0 %v491
    %535 = vmatprep.subr.bf16.mxu0 0
    %536 = vmatpush1.bf16.xpose.msra.mxu0 %v492
    %537 = vmatprep.subr.bf16.mxu0 0
    %538 = vmatpush1.bf16.xpose.msra.mxu0 0
    %539 = vmatprep.subr.bf16.mxu0 0
    %540 = vmatpush1.bf16.xpose.msra.mxu0 0
    %541 = vmatprep.subr.bf16.mxu0 0
    %542 = vmatpush1.bf16.xpose.msra.mxu0 0
    %543 = vmatprep.subr.bf16.mxu0 0
    %544 = vmatpush1.bf16.xpose.msra.mxu0 0
    %545 = vmatprep.subr.bf16.mxu0 0
    %546 = vmatpush1.bf16.xpose.msra.mxu0 0
    %547 = vmatprep.subr.bf16.mxu0 0
    %548 = vmatpush1.bf16.xpose.msra.mxu0 0
    %549 = vmatprep.subr.bf16.mxu0 0
    %550 = vmatpush1.bf16.xpose.msra.mxu0 0
    %551 = vmatprep.subr.bf16.mxu0 0
    %552 = vmatpush1.bf16.xpose.msra.mxu0 0
    %553 = vmatprep.subr.bf16.mxu0 0
    %554 = vmatpush1.bf16.xpose.msra.mxu0 0
    %555 = vmatprep.subr.bf16.mxu0 0
    %556 = vmatpush1.bf16.xpose.msra.mxu0 0
    %557 = vmatprep.subr.bf16.mxu0 0
    %558 = vmatpush1.bf16.xpose.msra.mxu0 0
    %559 = vmatprep.subr.bf16.mxu0 0
    %560 = vmatpush1.bf16.xpose.msra.mxu0 0
    %561 = vmatprep.subr.bf16.mxu0 0
    %562 = vmatpush1.bf16.xpose.msra.mxu0 0
    %563 = vmatprep.subr.bf16.mxu0 0
    %564 = vmatpush1.bf16.xpose.msra.mxu0 0
    %565 = vmatprep.mubr.bf16.mxu0 0
    %566 = vmatmul.mubr.bf16.gmra.mrb[0].mxu0 %v58
    %v567 = vpop.f32.mrb[0].mxu0
    %v568 = vadd.f32 0.0, %v567
    %v569 = vpop.f32.mrb[0].mxu0
    %v570 = vpop.f32.mrb[0].mxu0
    %v571 = vpop.f32.mrb[0].mxu0
    %572 = vdwg.mxu0
    %vm573 = vcmask 261120
    %v574 = vsel %vm573, %v528, 0.0
    %v575 = vsel %vm573, %v568, 0.0
    %576 = vst [vmem:[#allocation8] sm:$0xff] %v574
    %577 = vst [vmem:[#allocation8 + $0x8] sm:$0xff] %v575
    // Predicated region
    $region26: #{tpu_custom_call.1} parent=1 // pred_check
      _
    $region27: #{tpu_custom_call.1} parent=1 // pred_check_branch
      %579 = sbr.rel (0) target = $region29
    $region28: #{tpu_custom_call.1} parent=1 // pred_region
      %s581 = ssub.s32 256, 256
      %582 = vsyncadd [#allocation4], %s581
      %s583 = sshll.u32 [#allocation8], 4
      %s584 = int_to_ptr.vmem [resolvable:$true] %s583
      %589 = dma.vmem_to_hbm [thread:$0]  %s584, 256, %s3, [#allocation4], 128, 128, 8
    $region29: #{tpu_custom_call.1} parent=1 // pred_fallthru
      _
    // Predicated region
    $region30: #{tpu_custom_call.1} parent=1 // pred_check
      _
    $region31: #{tpu_custom_call.1} parent=1 // pred_check_branch
      %591 = sbr.rel (0) target = $region33
    $region32: #{tpu_custom_call.1} parent=1 // pred_region
      %592 = dma.done [#allocation4], 256
    $region33: #{tpu_custom_call.1} parent=1 // pred_fallthru
      _
    %593 = vsyncpa [#allocation3], 1
    %594 = vsyncpa [#allocation6], 1
    %595 = vsyncpa [#allocation4], 1

</llo_original>
